<compile_context>
chip_gen: v7x
topology: tpu7x:2x2x1
jax: 0.10.0
libtpu: 0.0.40
codegen_flags: <defaults>
</compile_context>

<pallas_src>
import functools

import jax
import jax.numpy as jnp
from jax.experimental import pallas as pl
from jax.experimental.pallas import tpu as pltpu


def _tir_kernel(*refs, has_expand):
    if has_expand:
        (x_ref, w1_ref, s1_ref, b1_ref,
         wq_ref, cq_ref, w3_ref, b3_ref, o_ref) = refs
    else:
        (x_ref, wq_ref, cq_ref, w3_ref, b3_ref, o_ref) = refs

    x = x_ref[...]                                   # (Cin, TP), pixels on lanes

    # ---- stage 1: 1x1 expand conv + BN + ReLU6 ------------------------------
    # Contraction over Cin (tiny) -> VPU FMAs instead of a lane/K-sparse matmul.
    if has_expand:
        w1 = w1_ref[...]                             # (hidden, Cin)
        h = w1[:, 0:1] * x[0:1, :]
        for ci in range(1, w1.shape[1]):
            h = h + w1[:, ci:ci + 1] * x[ci:ci + 1, :]
        h = jnp.clip(h * s1_ref[...] + b1_ref[...], 0.0, 6.0)   # folded BN + ReLU6
    else:
        h = x                                        # hidden == Cin

    # ---- stage 2: depthwise ConvTranspose2d(k=2, s=2) + BN + ReLU6 ----------
    # No tap overlap: each of the 4 (di, dj) taps is a per-channel scale+shift.
    # Stack the 4 taps on the sublane axis (rows q*hidden + h).
    d = jnp.concatenate([h, h, h, h], axis=0)        # (4*hidden, TP)
    d = jnp.clip(d * wq_ref[...] + cq_ref[...], 0.0, 6.0)

    # ---- stage 3: 1x1 projection conv (bias) --------------------------------
    # Single MXU dot with a block-diagonal weight: (4*Cout, 4*hidden) @ (4*hidden, TP).
    y = jnp.dot(w3_ref[...], d, preferred_element_type=jnp.float32) + b3_ref[...]
    o_ref[...] = y.astype(o_ref.dtype)               # (4*Cout, TP), lane-dense store


def transposed_inverted_residual_pallas(x_nchw, kernel_params, *, expand_ratio):
    """x_nchw: (N, Cin, H, W) float32. Returns (N, Cout, 2H, 2W) float32."""
    x = x_nchw.astype(jnp.float32)
    N, Cin, H, W = x.shape
    has_expand = (expand_ratio != 1)
    if has_expand:
        w1, s1, b1, wq, cq, w3blk, b3 = kernel_params
    else:
        wq, cq, w3blk, b3 = kernel_params
    Cout = w3blk.shape[0] // 4

    LANE = 128
    HW = H * W
    HW_pad = ((HW + LANE - 1) // LANE) * LANE
    # Largest lane-dense pixel tile that divides the padded spatial extent.
    TP = next(t for t in (1024, 512, 256, 128) if HW_pad % t == 0)

    x3 = x.reshape(N, Cin, HW)                       # pure reshape, no transpose
    if HW_pad != HW:
        x3 = jnp.pad(x3, ((0, 0), (0, 0), (0, HW_pad - HW)))

    grid = (N, HW_pad // TP)

    # Constant index_maps -> weight blocks are fetched once and stay resident.
    def wspec(a):
        return pl.BlockSpec(a.shape, lambda n, t: (0,) * a.ndim)

    in_arrays = [x3]
    in_specs = [pl.BlockSpec((None, Cin, TP), lambda n, t: (n, 0, t))]
    if has_expand:
        in_arrays += [w1, s1, b1]
        in_specs += [wspec(w1), wspec(s1), wspec(b1)]
    in_arrays += [wq, cq, w3blk, b3]
    in_specs += [wspec(wq), wspec(cq), wspec(w3blk), wspec(b3)]

    kernel = functools.partial(_tir_kernel, has_expand=has_expand)

    out_quad = pl.pallas_call(
        kernel,
        out_shape=jax.ShapeDtypeStruct((N, 4 * Cout, HW_pad), jnp.float32),
        grid_spec=pltpu.PrefetchScalarGridSpec(
            num_scalar_prefetch=0,
            grid=grid,
            in_specs=in_specs,
            out_specs=pl.BlockSpec((None, 4 * Cout, TP), lambda n, t: (n, 0, t)),
        ),
        compiler_params=pltpu.CompilerParams(
            dimension_semantics=("parallel", "parallel"),
            vmem_limit_bytes=32 * 1024 * 1024),
    )(*in_arrays)

    # Un-interleave the quad taps into the full-resolution NCHW output.
    # out_quad[n, q*Cout + co, i*W + j] == out[n, co, 2i + di, 2j + dj], q = 2*di + dj
    O = out_quad[:, :, :HW].reshape(N, 2, 2, Cout, H, W)   # (n, di, dj, co, i, j)
    O = O.transpose(0, 3, 4, 1, 5, 2)                      # (n, co, i, di, j, dj)
    return O.reshape(N, Cout, 2 * H, 2 * W)


# ----------------------- deterministic parameter init -----------------------
def make_params(key, in_planes, out_planes, expand_ratio):
    hidden = int(round(in_planes * expand_ratio))
    eps = 1e-5
    ks = jax.random.split(key, 13)

    def bn(kg, kb, km, kv, c):
        gamma = 1.0 + 0.1 * jax.random.normal(kg, (c,), jnp.float32)
        beta = 0.05 * jax.random.normal(kb, (c,), jnp.float32)
        mean = 0.1 * jax.random.normal(km, (c,), jnp.float32)
        var = jax.random.uniform(kv, (c,), jnp.float32, 0.5, 1.5)
        return gamma, beta, mean, var

    # torch-shaped raw params
    w1_t = 0.3 * jax.random.normal(ks[0], (hidden, in_planes), jnp.float32)   # (O, I) 1x1, no bias
    bn1 = bn(ks[1], ks[2], ks[3], ks[4], hidden)
    wT_t = 0.3 * jax.random.normal(ks[5], (hidden, 1, 2, 2), jnp.float32)     # ConvTranspose2d (in, out/g, 2, 2)
    bT_t = 0.05 * jax.random.normal(ks[6], (hidden,), jnp.float32)            # ConvTranspose2d bias
    bn2 = bn(ks[7], ks[8], ks[9], ks[10], hidden)
    w3_t = 0.3 * jax.random.normal(ks[11], (out_planes, hidden), jnp.float32) # (O, I) 1x1
    b3_t = 0.05 * jax.random.normal(ks[12], (out_planes,), jnp.float32)

    def fold(gamma, beta, mean, var):
        s = gamma / jnp.sqrt(var + eps)
        return s, beta - mean * s

    s1, b1 = fold(*bn1)
    s2, b2 = fold(*bn2)

    # Fold BN2 and the transposed-conv bias into the 4 per-channel taps.
    wq = wT_t.reshape(hidden, 4) * s2[:, None]             # (hidden, 4), q = 2*di + dj
    wq_stack = wq.T.reshape(4 * hidden, 1)                 # row q*hidden + h
    cq_stack = jnp.tile((bT_t * s2 + b2)[:, None], (4, 1))  # (4*hidden, 1)

    # Block-diagonal projection weight so all 4 quads project in one dot.
    w3_blk = jnp.kron(jnp.eye(4, dtype=jnp.float32), w3_t)  # (4*Cout, 4*hidden)
    b3_stack = jnp.tile(b3_t[:, None], (4, 1))               # (4*Cout, 1)

    if expand_ratio != 1:
        kernel_params = (w1_t, s1[:, None], b1[:, None],
                         wq_stack, cq_stack, w3_blk, b3_stack)
    else:
        kernel_params = (wq_stack, cq_stack, w3_blk, b3_stack)
    torch_params = (w1_t, bn1, wT_t, bT_t, bn2, w3_t, b3_t)
    return kernel_params, torch_params


# --------------------------- pure-JAX reference ------------------------------
def reference_nchw(x, torch_params, *, expand_ratio, eps=1e-5):
    w1_t, bn1, wT_t, bT_t, bn2, w3_t, b3_t = torch_params

    def bn_apply(y, p):
        gamma, beta, mean, var = p
        s = gamma / jnp.sqrt(var + eps)
        return y * s[None, :, None, None] + (beta - mean * s)[None, :, None, None]

    h = x
    if expand_ratio != 1:
        h = jnp.einsum('oc,nchw->nohw', w1_t, h, precision='highest')
        h = jnp.clip(bn_apply(h, bn1), 0.0, 6.0)

    # depthwise ConvTranspose2d: kernel 2, stride 2, padding 0, groups = channels
    N, C, H, W = h.shape
    wt = wT_t[:, 0]                                              # (C, 2, 2)
    up = h[:, :, :, None, :, None] * wt[None, :, None, :, None, :]  # (N,C,H,2,W,2)
    up = up.reshape(N, C, 2 * H, 2 * W) + bT_t[None, :, None, None]
    h = jnp.clip(bn_apply(up, bn2), 0.0, 6.0)

    y = jnp.einsum('oc,nchw->nohw', w3_t, h, precision='highest')
    return y + b3_t[None, :, None, None]


if __name__ == "__main__":
    # TransposedInvertedResidual(in_planes=4, out_planes=4, expand_ratio=6)
    N, Cin, H, W = 2, 4, 16, 16
    Cout, expand_ratio = 4, 6

    key = jax.random.PRNGKey(0)
    kx, kp = jax.random.split(key)
    x = jax.random.normal(kx, (N, Cin, H, W), jnp.float32)

    kernel_params, torch_params = make_params(kp, Cin, Cout, expand_ratio)

    out = transposed_inverted_residual_pallas(x, kernel_params,
                                              expand_ratio=expand_ratio)
    out = jax.block_until_ready(out)

    ref = reference_nchw(x, torch_params, expand_ratio=expand_ratio)
    assert out.shape == ref.shape == (N, Cout, 2 * H, 2 * W), (out.shape, ref.shape)
    max_err = float(jnp.max(jnp.abs(out - ref)))
    assert jnp.allclose(out, ref, atol=2e-4, rtol=2e-4), max_err

    print("KERNEL_OK")
</pallas_src>

<mosaic_0001>
module attributes {stable_mosaic.version = 11 : i64} {
  func.func @_tir_kernel(%arg0: i32, %arg1: i32, %arg2: memref<1x4x256xf32, #tpu.memory_space<vmem>>, %arg3: memref<24x4xf32, #tpu.memory_space<vmem>>, %arg4: memref<24x1xf32, #tpu.memory_space<vmem>>, %arg5: memref<24x1xf32, #tpu.memory_space<vmem>>, %arg6: memref<96x1xf32, #tpu.memory_space<vmem>>, %arg7: memref<96x1xf32, #tpu.memory_space<vmem>>, %arg8: memref<16x96xf32, #tpu.memory_space<vmem>>, %arg9: memref<16x1xf32, #tpu.memory_space<vmem>>, %arg10: memref<1x16x256xf32, #tpu.memory_space<vmem>>) attributes {dimension_semantics = [#tpu.dimension_semantics<parallel>, #tpu.dimension_semantics<parallel>], iteration_bounds = array<i64: 2, 1>, scalar_prefetch = 0 : i64, scratch_operands = 0 : i64, tpu.core_type = #tpu.core_type<tc>, window_params = [{transform_indices = @transform_0, window_bounds = array<i64: 1, 4, 256>}, {pipeline_mode = #tpu.pipeline_mode<synchronous>, transform_indices = @transform_1, window_bounds = array<i64: 24, 4>}, {pipeline_mode = #tpu.pipeline_mode<synchronous>, transform_indices = @transform_2, window_bounds = array<i64: 24, 1>}, {pipeline_mode = #tpu.pipeline_mode<synchronous>, transform_indices = @transform_3, window_bounds = array<i64: 24, 1>}, {pipeline_mode = #tpu.pipeline_mode<synchronous>, transform_indices = @transform_4, window_bounds = array<i64: 96, 1>}, {pipeline_mode = #tpu.pipeline_mode<synchronous>, transform_indices = @transform_5, window_bounds = array<i64: 96, 1>}, {pipeline_mode = #tpu.pipeline_mode<synchronous>, transform_indices = @transform_6, window_bounds = array<i64: 16, 96>}, {pipeline_mode = #tpu.pipeline_mode<synchronous>, transform_indices = @transform_7, window_bounds = array<i64: 16, 1>}, {transform_indices = @transform_8, window_bounds = array<i64: 1, 16, 256>}]} {
    %c0 = arith.constant 0 : index
    %c0_0 = arith.constant 0 : index
    %c0_1 = arith.constant 0 : index
    %0 = vector.load %arg2[%c0, %c0_0, %c0_1] : memref<1x4x256xf32, #tpu.memory_space<vmem>>, vector<1x4x256xf32>
    %1 = vector.shape_cast %0 : vector<1x4x256xf32> to vector<4x256xf32>
    %c0_2 = arith.constant 0 : index
    %c0_3 = arith.constant 0 : index
    %2 = vector.load %arg3[%c0_2, %c0_3] : memref<24x4xf32, #tpu.memory_space<vmem>>, vector<24x4xf32>
    %3 = vector.extract_strided_slice %2 {offsets = [0, 0], sizes = [24, 1], strides = [1, 1]} : vector<24x4xf32> to vector<24x1xf32>
    %4 = vector.extract_strided_slice %1 {offsets = [0, 0], sizes = [1, 256], strides = [1, 1]} : vector<4x256xf32> to vector<1x256xf32>
    %5 = vector.broadcast %3 : vector<24x1xf32> to vector<24x256xf32>
    %6 = vector.broadcast %4 : vector<1x256xf32> to vector<24x256xf32>
    %7 = arith.mulf %5, %6 : vector<24x256xf32>
    %8 = vector.extract_strided_slice %2 {offsets = [0, 1], sizes = [24, 1], strides = [1, 1]} : vector<24x4xf32> to vector<24x1xf32>
    %9 = vector.extract_strided_slice %1 {offsets = [1, 0], sizes = [1, 256], strides = [1, 1]} : vector<4x256xf32> to vector<1x256xf32>
    %10 = vector.broadcast %8 : vector<24x1xf32> to vector<24x256xf32>
    %11 = vector.broadcast %9 : vector<1x256xf32> to vector<24x256xf32>
    %12 = arith.mulf %10, %11 : vector<24x256xf32>
    %13 = arith.addf %7, %12 : vector<24x256xf32>
    %14 = vector.extract_strided_slice %2 {offsets = [0, 2], sizes = [24, 1], strides = [1, 1]} : vector<24x4xf32> to vector<24x1xf32>
    %15 = vector.extract_strided_slice %1 {offsets = [2, 0], sizes = [1, 256], strides = [1, 1]} : vector<4x256xf32> to vector<1x256xf32>
    %16 = vector.broadcast %14 : vector<24x1xf32> to vector<24x256xf32>
    %17 = vector.broadcast %15 : vector<1x256xf32> to vector<24x256xf32>
    %18 = arith.mulf %16, %17 : vector<24x256xf32>
    %19 = arith.addf %13, %18 : vector<24x256xf32>
    %20 = vector.extract_strided_slice %2 {offsets = [0, 3], sizes = [24, 1], strides = [1, 1]} : vector<24x4xf32> to vector<24x1xf32>
    %21 = vector.extract_strided_slice %1 {offsets = [3, 0], sizes = [1, 256], strides = [1, 1]} : vector<4x256xf32> to vector<1x256xf32>
    %22 = vector.broadcast %20 : vector<24x1xf32> to vector<24x256xf32>
    %23 = vector.broadcast %21 : vector<1x256xf32> to vector<24x256xf32>
    %24 = arith.mulf %22, %23 : vector<24x256xf32>
    %25 = arith.addf %19, %24 : vector<24x256xf32>
    %c0_4 = arith.constant 0 : index
    %c0_5 = arith.constant 0 : index
    %26 = vector.load %arg4[%c0_4, %c0_5] : memref<24x1xf32, #tpu.memory_space<vmem>>, vector<24x1xf32>
    %27 = vector.broadcast %26 : vector<24x1xf32> to vector<24x256xf32>
    %28 = arith.mulf %25, %27 : vector<24x256xf32>
    %c0_6 = arith.constant 0 : index
    %c0_7 = arith.constant 0 : index
    %29 = vector.load %arg5[%c0_6, %c0_7] : memref<24x1xf32, #tpu.memory_space<vmem>>, vector<24x1xf32>
    %30 = vector.broadcast %29 : vector<24x1xf32> to vector<24x256xf32>
    %31 = arith.addf %28, %30 : vector<24x256xf32>
    %cst = arith.constant 0.000000e+00 : f32
    %cst_8 = arith.constant 6.000000e+00 : f32
    %32 = vector.broadcast %cst : f32 to vector<24x256xf32>
    %33 = arith.maximumf %32, %31 : vector<24x256xf32>
    %34 = vector.broadcast %cst_8 : f32 to vector<24x256xf32>
    %35 = arith.minimumf %34, %33 : vector<24x256xf32>
    %36 = tpu.concatenate %35, %35, %35, %35 in 0 : vector<24x256xf32>, vector<24x256xf32>, vector<24x256xf32>, vector<24x256xf32> -> vector<96x256xf32>
    %c0_9 = arith.constant 0 : index
    %c0_10 = arith.constant 0 : index
    %37 = vector.load %arg6[%c0_9, %c0_10] : memref<96x1xf32, #tpu.memory_space<vmem>>, vector<96x1xf32>
    %38 = vector.broadcast %37 : vector<96x1xf32> to vector<96x256xf32>
    %39 = arith.mulf %36, %38 : vector<96x256xf32>
    %c0_11 = arith.constant 0 : index
    %c0_12 = arith.constant 0 : index
    %40 = vector.load %arg7[%c0_11, %c0_12] : memref<96x1xf32, #tpu.memory_space<vmem>>, vector<96x1xf32>
    %41 = vector.broadcast %40 : vector<96x1xf32> to vector<96x256xf32>
    %42 = arith.addf %39, %41 : vector<96x256xf32>
    %cst_13 = arith.constant 0.000000e+00 : f32
    %cst_14 = arith.constant 6.000000e+00 : f32
    %43 = vector.broadcast %cst_13 : f32 to vector<96x256xf32>
    %44 = arith.maximumf %43, %42 : vector<96x256xf32>
    %45 = vector.broadcast %cst_14 : f32 to vector<96x256xf32>
    %46 = arith.minimumf %45, %44 : vector<96x256xf32>
    %c0_15 = arith.constant 0 : index
    %c0_16 = arith.constant 0 : index
    %47 = vector.load %arg8[%c0_15, %c0_16] : memref<16x96xf32, #tpu.memory_space<vmem>>, vector<16x96xf32>
    %cst_17 = arith.constant dense<0.000000e+00> : vector<16x256xf32>
    %48 = tpu.matmul %47, %46, %cst_17 {dimension_numbers = #tpu.dot_dimension_numbers<[1], [0], [0], [1], [0, 0, 1, 1], [], []>} : vector<16x96xf32>, vector<96x256xf32>, vector<16x256xf32> -> vector<16x256xf32>
    %c0_18 = arith.constant 0 : index
    %c0_19 = arith.constant 0 : index
    %49 = vector.load %arg9[%c0_18, %c0_19] : memref<16x1xf32, #tpu.memory_space<vmem>>, vector<16x1xf32>
    %50 = vector.broadcast %49 : vector<16x1xf32> to vector<16x256xf32>
    %51 = arith.addf %48, %50 : vector<16x256xf32>
    %c0_20 = arith.constant 0 : index
    %c0_21 = arith.constant 0 : index
    %c0_22 = arith.constant 0 : index
    %52 = vector.load %arg10[%c0_20, %c0_21, %c0_22] : memref<1x16x256xf32, #tpu.memory_space<vmem>>, vector<1x16x256xf32>
    %53 = vector.shape_cast %52 : vector<1x16x256xf32> to vector<16x256xf32>
    %54 = vector.shape_cast %51 : vector<16x256xf32> to vector<1x16x256xf32>
    tpu.vector_store %arg10[%c0_20, %c0_21, %c0_22], %54 {strides = array<i32>} : memref<1x16x256xf32, #tpu.memory_space<vmem>>, vector<1x16x256xf32>,
    return
  }
  func.func @transform_0(%arg0: i32, %arg1: i32) -> (i32, i32, i32) {
    %c0_i32 = arith.constant 0 : i32
    %c0_i32_0 = arith.constant 0 : i32
    return %arg0, %c0_i32, %arg1 : i32, i32, i32
  }
  func.func @transform_1(%arg0: i32, %arg1: i32) -> (i32, i32) {
    %c0_i32 = arith.constant 0 : i32
    %c0_i32_0 = arith.constant 0 : i32
    %c0_i32_1 = arith.constant 0 : i32
    return %c0_i32, %c0_i32_0 : i32, i32
  }
  func.func @transform_2(%arg0: i32, %arg1: i32) -> (i32, i32) {
    %c0_i32 = arith.constant 0 : i32
    %c0_i32_0 = arith.constant 0 : i32
    %c0_i32_1 = arith.constant 0 : i32
    return %c0_i32, %c0_i32_0 : i32, i32
  }
  func.func @transform_3(%arg0: i32, %arg1: i32) -> (i32, i32) {
    %c0_i32 = arith.constant 0 : i32
    %c0_i32_0 = arith.constant 0 : i32
    %c0_i32_1 = arith.constant 0 : i32
    return %c0_i32, %c0_i32_0 : i32, i32
  }
  func.func @transform_4(%arg0: i32, %arg1: i32) -> (i32, i32) {
    %c0_i32 = arith.constant 0 : i32
    %c0_i32_0 = arith.constant 0 : i32
    %c0_i32_1 = arith.constant 0 : i32
    return %c0_i32, %c0_i32_0 : i32, i32
  }
  func.func @transform_5(%arg0: i32, %arg1: i32) -> (i32, i32) {
    %c0_i32 = arith.constant 0 : i32
    %c0_i32_0 = arith.constant 0 : i32
    %c0_i32_1 = arith.constant 0 : i32
    return %c0_i32, %c0_i32_0 : i32, i32
  }
  func.func @transform_6(%arg0: i32, %arg1: i32) -> (i32, i32) {
    %c0_i32 = arith.constant 0 : i32
    %c0_i32_0 = arith.constant 0 : i32
    %c0_i32_1 = arith.constant 0 : i32
    return %c0_i32, %c0_i32_0 : i32, i32
  }
  func.func @transform_7(%arg0: i32, %arg1: i32) -> (i32, i32) {
    %c0_i32 = arith.constant 0 : i32
    %c0_i32_0 = arith.constant 0 : i32
    %c0_i32_1 = arith.constant 0 : i32
    return %c0_i32, %c0_i32_0 : i32, i32
  }
  func.func @transform_8(%arg0: i32, %arg1: i32) -> (i32, i32, i32) {
    %c0_i32 = arith.constant 0 : i32
    %c0_i32_0 = arith.constant 0 : i32
    return %arg0, %c0_i32, %arg1 : i32, i32, i32
  }
}

</mosaic_0001>

<llo_original>
// kernel: tpu_custom_call.1
$region0: #{tpu_custom_call.1}
  #allocation0 [shape = 'u32[]', space=smem, size = 0x4, offset = 0x4, fixed_abs, tag = 'smem constant byte address 0x4 - core index']
  #allocation1 [shape = 'u32[144,128]{1,0:T(1,128)}', space=vmem, size = 0x12000, scoped, tag = 'internal scratch']
  %s0 = inlined_call_operand.vmem [shape: f32[2,4,256], index: 0, kind: input, shape index: {}]
  %s1 = inlined_call_operand.vmem [shape: f32[24,4], index: 1, kind: input, shape index: {}]
  %s2 = inlined_call_operand.vmem [shape: f32[24,1], index: 2, kind: input, shape index: {}]
  %s3 = inlined_call_operand.vmem [shape: f32[24,1], index: 3, kind: input, shape index: {}]
  %s4 = inlined_call_operand.vmem [shape: f32[96,1], index: 4, kind: input, shape index: {}]
  %s5 = inlined_call_operand.vmem [shape: f32[96,1], index: 5, kind: input, shape index: {}]
  %s6 = inlined_call_operand.vmem [shape: f32[16,96], index: 6, kind: input, shape index: {}]
  %s7 = inlined_call_operand.vmem [shape: f32[16,1], index: 7, kind: input, shape index: {}]
  %s8 = inlined_call_operand.hbm [shape: f32[2,16,256], index: 8, kind: output, shape index: {}]
  %s9 = sld [smem:[#allocation0]]
  $region65: #{tpu_custom_call.1} parent=0
    _
  %s11 = ssub.s32 1, %s9
  %s12 = scalar_select 0, %s11, %s9
  $region1: #{tpu_custom_call.1} parent=0
    #allocation2 [shape = 'u8[32768]{0}', space=vmem, size = 0x8000, scoped, tag = 'output window, operand 0']
    #allocation3 [shape = 's32[2]{0}', space=sflag, size = 0x8, scoped, tag = 'scoped memory for tpu_custom_call.1']
    %13 = vsyncpa [#allocation3], 0
    %s14 = scalar_lea.sflag [#allocation3], 1
    %15 = vsyncpa %s14, 0
    loop: start=0, step=1, limit=4
    $region2: #{tpu_custom_call.1} parent=1 // loop_pre_header
      _
    $region3: #{tpu_custom_call.1} parent=1 // loop_header
      %s17 = sphi 0, %s21
      %p18 = scmp.ge.s32.totalorder %s17, 4
      %s24 = sphi 0, %s36
      %s25 = sphi 0, %s32
      %s26 = sphi 0, %s24
      %s27 = sphi 0, %s25
      %s28 = sphi 0, %s26
      %s29 = sphi 0, %s27
      %s41 = sphi 0, %s43
      %s44 = sphi 0, %s41
      %s45 = sphi 0, %s44
      %s61 = sphi 0, %s45
      %s65 = sphi 0, %s65
      %s67 = sphi 0, %s65
      %s68 = sphi 0, %s67
      %s82 = sphi 0, %s68
      %s86 = sphi 0, %s86
      %s88 = sphi 0, %s86
      %s89 = sphi 0, %s88
      %s103 = sphi 0, %s89
      %s107 = sphi 0, %s107
      %s109 = sphi 0, %s107
      %s110 = sphi 0, %s109
      %s124 = sphi 0, %s110
      %s128 = sphi 0, %s128
      %s130 = sphi 0, %s128
      %s131 = sphi 0, %s130
      %s145 = sphi 0, %s131
      %s149 = sphi 0, %s149
      %s151 = sphi 0, %s149
      %s152 = sphi 0, %s151
      %s166 = sphi 0, %s152
      %s170 = sphi 0, %s170
      %s172 = sphi 0, %s170
      %s173 = sphi 0, %s172
      %s187 = sphi 0, %s173
      %s191 = sphi 0, %s191
      %s193 = sphi 0, %s191
      %s194 = sphi 0, %s193
      %s208 = sphi 0, %s194
      %s216 = sphi 0, %s218
      %s219 = sphi 0, %s216
      %s220 = sphi 0, %s219
      %s236 = sphi 0, %s220
    $region4: #{tpu_custom_call.1} parent=1 // loop_header_branch
      %20 = sbr.rel (%p18) target = $region8
    $region5: #{tpu_custom_call.1} parent=1 // loop_body
      %s22 = ssub.s32 %s17, 1
      %s23 = ssub.s32 %s17, 2
      %s30 = sadd.s32 1, %s25
      %p31 = scmp.ge.s32.totalorder %s30, 1
      %s32 = scalar_select %p31, 0, %s30
      %s33 = sadd.s32 1, %s24
      %s34 = scalar_select %p31, %s33, %s24
      %p35 = scmp.ge.s32.totalorder %s34, 2
      %s36 = scalar_select %p35, 0, %s34
      %s37 = ssub.s32 %s24, %s36
      %s38 = ssub.s32 %s25, %s32
      %s39 = sor.u32 %s37, %s38
      %p40 = scmp.eq.s32.totalorder %s39, 0
      %s42 = sadd.s32 %s41, 1
      %s43 = scalar_select %p40, %s41, %s42
      %p46 = pneg %p40
      %p47 = scmp.eq.s32.totalorder %s17, 1
      %p48 = por %p46, %p47
      %p49 = scmp.ne.s32.totalorder %s41, %s44
      %p50 = scmp.eq.s32.totalorder %s17, 0
      %p51 = por %p49, %p50
      %p52 = scmp.ne.s32.totalorder %s41, %s44
      %p53 = scmp.eq.s32.totalorder %s22, 1
      %p54 = por %p52, %p53
      %p55 = scmp.ne.s32.totalorder %s44, %s45
      %p56 = scmp.eq.s32.totalorder %s22, 0
      %p57 = por %p55, %p56
      %p58 = scmp.ne.s32.totalorder %s44, %s45
      %p59 = scmp.eq.s32.totalorder %s23, 1
      %p60 = por %p58, %p59
      %p62 = scmp.ne.s32.totalorder %s45, %s61
      %p63 = scmp.eq.s32.totalorder %s23, 0
      %p64 = por %p62, %p63
      %s66 = sadd.s32 %s65, 1
      %p69 = scmp.eq.s32.totalorder %s17, 1
      %p70 = scmp.ne.s32.totalorder %s65, %s67
      %p71 = scmp.eq.s32.totalorder %s17, 0
      %p72 = por %p70, %p71
      %p73 = scmp.ne.s32.totalorder %s65, %s67
      %p74 = scmp.eq.s32.totalorder %s22, 1
      %p75 = por %p73, %p74
      %p76 = scmp.ne.s32.totalorder %s67, %s68
      %p77 = scmp.eq.s32.totalorder %s22, 0
      %p78 = por %p76, %p77
      %p79 = scmp.ne.s32.totalorder %s67, %s68
      %p80 = scmp.eq.s32.totalorder %s23, 1
      %p81 = por %p79, %p80
      %p83 = scmp.ne.s32.totalorder %s68, %s82
      %p84 = scmp.eq.s32.totalorder %s23, 0
      %p85 = por %p83, %p84
      %s87 = sadd.s32 %s86, 1
      %p90 = scmp.eq.s32.totalorder %s17, 1
      %p91 = scmp.ne.s32.totalorder %s86, %s88
      %p92 = scmp.eq.s32.totalorder %s17, 0
      %p93 = por %p91, %p92
      %p94 = scmp.ne.s32.totalorder %s86, %s88
      %p95 = scmp.eq.s32.totalorder %s22, 1
      %p96 = por %p94, %p95
      %p97 = scmp.ne.s32.totalorder %s88, %s89
      %p98 = scmp.eq.s32.totalorder %s22, 0
      %p99 = por %p97, %p98
      %p100 = scmp.ne.s32.totalorder %s88, %s89
      %p101 = scmp.eq.s32.totalorder %s23, 1
      %p102 = por %p100, %p101
      %p104 = scmp.ne.s32.totalorder %s89, %s103
      %p105 = scmp.eq.s32.totalorder %s23, 0
      %p106 = por %p104, %p105
      %s108 = sadd.s32 %s107, 1
      %p111 = scmp.eq.s32.totalorder %s17, 1
      %p112 = scmp.ne.s32.totalorder %s107, %s109
      %p113 = scmp.eq.s32.totalorder %s17, 0
      %p114 = por %p112, %p113
      %p115 = scmp.ne.s32.totalorder %s107, %s109
      %p116 = scmp.eq.s32.totalorder %s22, 1
      %p117 = por %p115, %p116
      %p118 = scmp.ne.s32.totalorder %s109, %s110
      %p119 = scmp.eq.s32.totalorder %s22, 0
      %p120 = por %p118, %p119
      %p121 = scmp.ne.s32.totalorder %s109, %s110
      %p122 = scmp.eq.s32.totalorder %s23, 1
      %p123 = por %p121, %p122
      %p125 = scmp.ne.s32.totalorder %s110, %s124
      %p126 = scmp.eq.s32.totalorder %s23, 0
      %p127 = por %p125, %p126
      %s129 = sadd.s32 %s128, 1
      %p132 = scmp.eq.s32.totalorder %s17, 1
      %p133 = scmp.ne.s32.totalorder %s128, %s130
      %p134 = scmp.eq.s32.totalorder %s17, 0
      %p135 = por %p133, %p134
      %p136 = scmp.ne.s32.totalorder %s128, %s130
      %p137 = scmp.eq.s32.totalorder %s22, 1
      %p138 = por %p136, %p137
      %p139 = scmp.ne.s32.totalorder %s130, %s131
      %p140 = scmp.eq.s32.totalorder %s22, 0
      %p141 = por %p139, %p140
      %p142 = scmp.ne.s32.totalorder %s130, %s131
      %p143 = scmp.eq.s32.totalorder %s23, 1
      %p144 = por %p142, %p143
      %p146 = scmp.ne.s32.totalorder %s131, %s145
      %p147 = scmp.eq.s32.totalorder %s23, 0
      %p148 = por %p146, %p147
      %s150 = sadd.s32 %s149, 1
      %p153 = scmp.eq.s32.totalorder %s17, 1
      %p154 = scmp.ne.s32.totalorder %s149, %s151
      %p155 = scmp.eq.s32.totalorder %s17, 0
      %p156 = por %p154, %p155
      %p157 = scmp.ne.s32.totalorder %s149, %s151
      %p158 = scmp.eq.s32.totalorder %s22, 1
      %p159 = por %p157, %p158
      %p160 = scmp.ne.s32.totalorder %s151, %s152
      %p161 = scmp.eq.s32.totalorder %s22, 0
      %p162 = por %p160, %p161
      %p163 = scmp.ne.s32.totalorder %s151, %s152
      %p164 = scmp.eq.s32.totalorder %s23, 1
      %p165 = por %p163, %p164
      %p167 = scmp.ne.s32.totalorder %s152, %s166
      %p168 = scmp.eq.s32.totalorder %s23, 0
      %p169 = por %p167, %p168
      %s171 = sadd.s32 %s170, 1
      %p174 = scmp.eq.s32.totalorder %s17, 1
      %p175 = scmp.ne.s32.totalorder %s170, %s172
      %p176 = scmp.eq.s32.totalorder %s17, 0
      %p177 = por %p175, %p176
      %p178 = scmp.ne.s32.totalorder %s170, %s172
      %p179 = scmp.eq.s32.totalorder %s22, 1
      %p180 = por %p178, %p179
      %p181 = scmp.ne.s32.totalorder %s172, %s173
      %p182 = scmp.eq.s32.totalorder %s22, 0
      %p183 = por %p181, %p182
      %p184 = scmp.ne.s32.totalorder %s172, %s173
      %p185 = scmp.eq.s32.totalorder %s23, 1
      %p186 = por %p184, %p185
      %p188 = scmp.ne.s32.totalorder %s173, %s187
      %p189 = scmp.eq.s32.totalorder %s23, 0
      %p190 = por %p188, %p189
      %s192 = sadd.s32 %s191, 1
      %p195 = scmp.eq.s32.totalorder %s17, 1
      %p196 = scmp.ne.s32.totalorder %s191, %s193
      %p197 = scmp.eq.s32.totalorder %s17, 0
      %p198 = por %p196, %p197
      %p199 = scmp.ne.s32.totalorder %s191, %s193
      %p200 = scmp.eq.s32.totalorder %s22, 1
      %p201 = por %p199, %p200
      %p202 = scmp.ne.s32.totalorder %s193, %s194
      %p203 = scmp.eq.s32.totalorder %s22, 0
      %p204 = por %p202, %p203
      %p205 = scmp.ne.s32.totalorder %s193, %s194
      %p206 = scmp.eq.s32.totalorder %s23, 1
      %p207 = por %p205, %p206
      %p209 = scmp.ne.s32.totalorder %s194, %s208
      %p210 = scmp.eq.s32.totalorder %s23, 0
      %p211 = por %p209, %p210
      %s212 = ssub.s32 %s24, %s36
      %s213 = ssub.s32 %s25, %s32
      %s214 = sor.u32 %s212, %s213
      %p215 = scmp.eq.s32.totalorder %s214, 0
      %s217 = sadd.s32 %s216, 1
      %s218 = scalar_select %p215, %s216, %s217
      %p221 = pneg %p215
      %p222 = scmp.eq.s32.totalorder %s17, 1
      %p223 = por %p221, %p222
      %p224 = scmp.ne.s32.totalorder %s216, %s219
      %p225 = scmp.eq.s32.totalorder %s17, 0
      %p226 = por %p224, %p225
      %p227 = scmp.ne.s32.totalorder %s216, %s219
      %p228 = scmp.eq.s32.totalorder %s22, 1
      %p229 = por %p227, %p228
      %p230 = scmp.ne.s32.totalorder %s219, %s220
      %p231 = scmp.eq.s32.totalorder %s22, 0
      %p232 = por %p230, %p231
      %p233 = scmp.ne.s32.totalorder %s219, %s220
      %p234 = scmp.eq.s32.totalorder %s23, 1
      %p235 = por %p233, %p234
      %p237 = scmp.ne.s32.totalorder %s220, %s236
      %p238 = scmp.eq.s32.totalorder %s23, 0
      %p239 = por %p237, %p238
      %p240 = scmp.le.s32.totalorder 1, %s17
      %p241 = scmp.lt.s32.totalorder %s17, 3
      %p242 = pnand %p240, %p241
      %p243 = pneg %p242
      // Predicated region
      $region9: #{tpu_custom_call.1} parent=5 // pred_check
        _
      $region10: #{tpu_custom_call.1} parent=5 // pred_check_branch
        %245 = sbr.rel (%p242) target = $region12
      $region11: #{tpu_custom_call.1} parent=5 // pred_region
        %s246 = ssub.s32 %s17, 1
        // Predicated region
        $region13: #{tpu_custom_call.1} parent=11 // pred_check
          %p247 = pneg %p78
        $region14: #{tpu_custom_call.1} parent=11 // pred_check_branch
          %249 = sbr.rel (%p247) target = $region16
        $region15: #{tpu_custom_call.1} parent=11 // pred_region
          _
        $region16: #{tpu_custom_call.1} parent=11 // pred_fallthru
          _
        // Predicated region
        $region17: #{tpu_custom_call.1} parent=11 // pred_check
          %p250 = pneg %p99
        $region18: #{tpu_custom_call.1} parent=11 // pred_check_branch
          %252 = sbr.rel (%p250) target = $region20
        $region19: #{tpu_custom_call.1} parent=11 // pred_region
          _
        $region20: #{tpu_custom_call.1} parent=11 // pred_fallthru
          _
        // Predicated region
        $region21: #{tpu_custom_call.1} parent=11 // pred_check
          %p253 = pneg %p120
        $region22: #{tpu_custom_call.1} parent=11 // pred_check_branch
          %255 = sbr.rel (%p253) target = $region24
        $region23: #{tpu_custom_call.1} parent=11 // pred_region
          _
        $region24: #{tpu_custom_call.1} parent=11 // pred_fallthru
          _
        // Predicated region
        $region25: #{tpu_custom_call.1} parent=11 // pred_check
          %p256 = pneg %p141
        $region26: #{tpu_custom_call.1} parent=11 // pred_check_branch
          %258 = sbr.rel (%p256) target = $region28
        $region27: #{tpu_custom_call.1} parent=11 // pred_region
          _
        $region28: #{tpu_custom_call.1} parent=11 // pred_fallthru
          _
        // Predicated region
        $region29: #{tpu_custom_call.1} parent=11 // pred_check
          %p259 = pneg %p162
        $region30: #{tpu_custom_call.1} parent=11 // pred_check_branch
          %261 = sbr.rel (%p259) target = $region32
        $region31: #{tpu_custom_call.1} parent=11 // pred_region
          _
        $region32: #{tpu_custom_call.1} parent=11 // pred_fallthru
          _
        // Predicated region
        $region33: #{tpu_custom_call.1} parent=11 // pred_check
          %p262 = pneg %p183
        $region34: #{tpu_custom_call.1} parent=11 // pred_check_branch
          %264 = sbr.rel (%p262) target = $region36
        $region35: #{tpu_custom_call.1} parent=11 // pred_region
          _
        $region36: #{tpu_custom_call.1} parent=11 // pred_fallthru
          _
        // Predicated region
        $region37: #{tpu_custom_call.1} parent=11 // pred_check
          %p265 = pneg %p204
        $region38: #{tpu_custom_call.1} parent=11 // pred_check_branch
          %267 = sbr.rel (%p265) target = $region40
        $region39: #{tpu_custom_call.1} parent=11 // pred_region
          _
        $region40: #{tpu_custom_call.1} parent=11 // pred_fallthru
          _
      $region12: #{tpu_custom_call.1} parent=5 // pred_fallthru
        _
      %p268 = scmp.lt.s32.totalorder %s17, 2
      // Predicated region
      $region41: #{tpu_custom_call.1} parent=5 // pred_check
        %p269 = pneg %p268
      $region42: #{tpu_custom_call.1} parent=5 // pred_check_branch
        %271 = sbr.rel (%p269) target = $region44
      $region43: #{tpu_custom_call.1} parent=5 // pred_region
        // Predicated region
        $region45: #{tpu_custom_call.1} parent=43 // pred_check
          %p272 = pneg %p51
        $region46: #{tpu_custom_call.1} parent=43 // pred_check_branch
          %274 = sbr.rel (%p272) target = $region48
        $region47: #{tpu_custom_call.1} parent=43 // pred_region
          %s275 = smul.u32 2, %s25
          %p276 = scmp.lt.s32.totalorder %s24, 1
          %s277 = scalar_select %p276, %s24, 1
          %p278 = scmp.lt.s32.totalorder %s275, 1
          %s279 = scalar_select %p278, %s275, 1
          %s280 = smul.addr %s277, 2
          %s281 = sadd.s32 %s279, %s280
          %s282 = smul.addr %s281, 4
          %s283 = scalar_lea.vmem %s0, %s282
          %s284 = smul.u32 2, %s25
        $region48: #{tpu_custom_call.1} parent=43 // pred_fallthru
          _
      $region44: #{tpu_custom_call.1} parent=5 // pred_fallthru
        _
      %p285 = scmp.le.s32.totalorder 1, %s17
      %p286 = scmp.lt.s32.totalorder %s17, 3
      %p287 = pnand %p285, %p286
      %p288 = pneg %p287
      // Predicated region
      $region49: #{tpu_custom_call.1} parent=5 // pred_check
        _
      $region50: #{tpu_custom_call.1} parent=5 // pred_check_branch
        %290 = sbr.rel (%p287) target = $region52
      $region51: #{tpu_custom_call.1} parent=5 // pred_region
        %s291 = ssub.s32 %s17, 1
        %s292 = smul.u32 2, %s27
        %p293 = scmp.lt.s32.totalorder %s26, 1
        %s294 = scalar_select %p293, %s26, 1
        %p295 = scmp.lt.s32.totalorder %s292, 1
        %s296 = scalar_select %p295, %s292, 1
        %s297 = smul.addr %s294, 2
        %s298 = sadd.s32 %s296, %s297
        %s299 = smul.addr %s298, 4
        %s300 = scalar_lea.vmem %s0, %s299
        %p301 = pneg %p57
        %p302 = pneg %p54
        %p303 = pneg %p78
        %p304 = pneg %p75
        %p305 = pneg %p99
        %p306 = pneg %p96
        %p307 = pneg %p120
        %p308 = pneg %p117
        %p309 = pneg %p141
        %p310 = pneg %p138
        %p311 = pneg %p162
        %p312 = pneg %p159
        %p313 = pneg %p183
        %p314 = pneg %p180
        %p315 = pneg %p204
        %p316 = pneg %p201
        %p317 = pneg %p232
        %p318 = pneg %p229
        %s319 = sand.u32 %s219, 1
        %s320 = scalar_lea.sflag [#allocation3], %s319
        %s321 = sand.u32 %s219, 1
        %s322 = smul.addr %s321, 32
        %s323 = scalar_lea.vmem [#allocation2], %s322
        %s324 = smul.u32 2, %s27
        %p325 = scmp.lt.s32.totalorder %s26, 1
        %s326 = scalar_select %p325, %s26, 1
        %p327 = scmp.lt.s32.totalorder %s324, 1
        %s328 = scalar_select %p327, %s324, 1
        %s329 = smul.addr %s326, 2
        %s330 = sadd.s32 %s328, %s329
        %s331 = smul.addr %s330, 4
        %s332 = scalar_lea.vmem %s0, %s331
        %s333 = smul.u32 2, %s27
        %s334 = smul.u32 2, %s27
        %v335 = vld [vmem:[%s332] sm:$0xff]
        %v336 = vld [vmem:[%s1] sm:$0xff]
        %v337 = vld [vmem:[%s1 + $0x8] sm:$0xff]
        %v338 = vld [vmem:[%s1 + $0x10] sm:$0xff]
        %340 = vset.pattern.permute.xlu0 0
        %341 = vperm.xlu0 %340, %v336
        %v342 = vpop.permute.xlu0 %341
        %345 = vset.pattern.permute.xlu0 0
        %346 = vperm.xlu0 %345, %v337
        %v347 = vpop.permute.xlu0 %346
        %350 = vset.pattern.permute.xlu0 0
        %351 = vperm.xlu0 %350, %v338
        %v352 = vpop.permute.xlu0 %351
        %v355 = vlaneseq
        %v356 = vshrl.u32 %v355, 7
        %v357 = vsub.s32 0, %v356
        %v358 = vrot.slane %v335, %v357
        %v359 = vlaneseq
        %v360 = vshrl.u32 %v359, 7
        %v361 = vsub.s32 4, %v360
        %v362 = vrot.slane %v335, %v361
        %v365 = vlaneseq
        %v366 = vshrl.u32 %v365, 7
        %v367 = vsub.s32 0, %v366
        %v368 = vrot.slane %v358, %v367
        %v369 = vlaneseq
        %v370 = vshrl.u32 %v369, 7
        %v371 = vsub.s32 0, %v370
        %v372 = vrot.slane %v362, %v371
        %v373 = vmul.f32 %v342, %v368
        %v374 = vmul.f32 %v342, %v372
        %v375 = vmul.f32 %v347, %v368
        %v376 = vmul.f32 %v347, %v372
        %v377 = vmul.f32 %v352, %v368
        %v378 = vmul.f32 %v352, %v372
        %379 = vset.pattern.permute.xlu0 1
        %380 = vperm.xlu0 %379, %v336
        %v381 = vpop.permute.xlu0 %380
        %383 = vset.pattern.permute.xlu0 1
        %384 = vperm.xlu0 %383, %v337
        %v385 = vpop.permute.xlu0 %384
        %387 = vset.pattern.permute.xlu0 1
        %388 = vperm.xlu0 %387, %v338
        %v389 = vpop.permute.xlu0 %388
        %v391 = vlaneseq
        %v392 = vshrl.u32 %v391, 7
        %v393 = vsub.s32 1, %v392
        %v394 = vrot.slane %v335, %v393
        %v395 = vlaneseq
        %v396 = vshrl.u32 %v395, 7
        %v397 = vsub.s32 5, %v396
        %v398 = vrot.slane %v335, %v397
        %v401 = vlaneseq
        %v402 = vshrl.u32 %v401, 7
        %v403 = vsub.s32 1, %v402
        %v404 = vrot.slane %v394, %v403
        %v405 = vlaneseq
        %v406 = vshrl.u32 %v405, 7
        %v407 = vsub.s32 1, %v406
        %v408 = vrot.slane %v398, %v407
        %v409 = vmul.f32 %v381, %v404
        %v410 = vmul.f32 %v381, %v408
        %v411 = vmul.f32 %v385, %v404
        %v412 = vmul.f32 %v385, %v408
        %v413 = vmul.f32 %v389, %v404
        %v414 = vmul.f32 %v389, %v408
        %v415 = vadd.f32 %v373, %v409
        %v416 = vadd.f32 %v374, %v410
        %v417 = vadd.f32 %v375, %v411
        %v418 = vadd.f32 %v376, %v412
        %v419 = vadd.f32 %v377, %v413
        %v420 = vadd.f32 %v378, %v414
        %421 = vset.pattern.permute.xlu0 2
        %422 = vperm.xlu0 %421, %v336
        %v423 = vpop.permute.xlu0 %422
        %425 = vset.pattern.permute.xlu0 2
        %426 = vperm.xlu0 %425, %v337
        %v427 = vpop.permute.xlu0 %426
        %429 = vset.pattern.permute.xlu0 2
        %430 = vperm.xlu0 %429, %v338
        %v431 = vpop.permute.xlu0 %430
        %v433 = vlaneseq
        %v434 = vshrl.u32 %v433, 7
        %v435 = vsub.s32 2, %v434
        %v436 = vrot.slane %v335, %v435
        %v437 = vlaneseq
        %v438 = vshrl.u32 %v437, 7
        %v439 = vsub.s32 6, %v438
        %v440 = vrot.slane %v335, %v439
        %v443 = vlaneseq
        %v444 = vshrl.u32 %v443, 7
        %v445 = vsub.s32 2, %v444
        %v446 = vrot.slane %v436, %v445
        %v447 = vlaneseq
        %v448 = vshrl.u32 %v447, 7
        %v449 = vsub.s32 2, %v448
        %v450 = vrot.slane %v440, %v449
        %v451 = vmul.f32 %v423, %v446
        %v452 = vmul.f32 %v423, %v450
        %v453 = vmul.f32 %v427, %v446
        %v454 = vmul.f32 %v427, %v450
        %v455 = vmul.f32 %v431, %v446
        %v456 = vmul.f32 %v431, %v450
        %v457 = vadd.f32 %v415, %v451
        %v458 = vadd.f32 %v416, %v452
        %v459 = vadd.f32 %v417, %v453
        %v460 = vadd.f32 %v418, %v454
        %v461 = vadd.f32 %v419, %v455
        %v462 = vadd.f32 %v420, %v456
        %463 = vset.pattern.permute.xlu0 3
        %464 = vperm.xlu0 %463, %v336
        %v465 = vpop.permute.xlu0 %464
        %467 = vset.pattern.permute.xlu0 3
        %468 = vperm.xlu0 %467, %v337
        %v469 = vpop.permute.xlu0 %468
        %471 = vset.pattern.permute.xlu0 3
        %472 = vperm.xlu0 %471, %v338
        %v473 = vpop.permute.xlu0 %472
        %v475 = vlaneseq
        %v476 = vshrl.u32 %v475, 7
        %v477 = vsub.s32 3, %v476
        %v478 = vrot.slane %v335, %v477
        %v479 = vlaneseq
        %v480 = vshrl.u32 %v479, 7
        %v481 = vsub.s32 7, %v480
        %v482 = vrot.slane %v335, %v481
        %v485 = vlaneseq
        %v486 = vshrl.u32 %v485, 7
        %v487 = vsub.s32 3, %v486
        %v488 = vrot.slane %v478, %v487
        %v489 = vlaneseq
        %v490 = vshrl.u32 %v489, 7
        %v491 = vsub.s32 3, %v490
        %v492 = vrot.slane %v482, %v491
        %v493 = vmul.f32 %v465, %v488
        %v494 = vmul.f32 %v465, %v492
        %v495 = vmul.f32 %v469, %v488
        %v496 = vmul.f32 %v469, %v492
        %v497 = vmul.f32 %v473, %v488
        %v498 = vmul.f32 %v473, %v492
        %v499 = vadd.f32 %v457, %v493
        %v500 = vadd.f32 %v458, %v494
        %v501 = vadd.f32 %v459, %v495
        %v502 = vadd.f32 %v460, %v496
        %v503 = vadd.f32 %v461, %v497
        %v504 = vadd.f32 %v462, %v498
        %v505 = vld [vmem:[%s2] sm:$0xff]
        %v506 = vld [vmem:[%s2 + $0x8] sm:$0xff]
        %v507 = vld [vmem:[%s2 + $0x10] sm:$0xff]
        %509 = vset.pattern.permute.xlu0 0
        %510 = vperm.xlu0 %509, %v505
        %v511 = vpop.permute.xlu0 %510
        %514 = vset.pattern.permute.xlu0 0
        %515 = vperm.xlu0 %514, %v506
        %v516 = vpop.permute.xlu0 %515
        %519 = vset.pattern.permute.xlu0 0
        %520 = vperm.xlu0 %519, %v507
        %v521 = vpop.permute.xlu0 %520
        %v523 = vmul.f32 %v499, %v511
        %v524 = vmul.f32 %v500, %v511
        %v525 = vmul.f32 %v501, %v516
        %v526 = vmul.f32 %v502, %v516
        %v527 = vmul.f32 %v503, %v521
        %v528 = vmul.f32 %v504, %v521
        %v529 = vld [vmem:[%s3] sm:$0xff]
        %v530 = vld [vmem:[%s3 + $0x8] sm:$0xff]
        %v531 = vld [vmem:[%s3 + $0x10] sm:$0xff]
        %533 = vset.pattern.permute.xlu0 0
        %534 = vperm.xlu0 %533, %v529
        %v535 = vpop.permute.xlu0 %534
        %538 = vset.pattern.permute.xlu0 0
        %539 = vperm.xlu0 %538, %v530
        %v540 = vpop.permute.xlu0 %539
        %543 = vset.pattern.permute.xlu0 0
        %544 = vperm.xlu0 %543, %v531
        %v545 = vpop.permute.xlu0 %544
        %v547 = vadd.f32 %v523, %v535
        %v548 = vadd.f32 %v524, %v535
        %v549 = vadd.f32 %v525, %v540
        %v550 = vadd.f32 %v526, %v540
        %v551 = vadd.f32 %v527, %v545
        %v552 = vadd.f32 %v528, %v545
        %v553 = vmax.f32 %v547, 0.0
        %v554 = vmax.f32 %v548, 0.0
        %v555 = vmax.f32 %v549, 0.0
        %v556 = vmax.f32 %v550, 0.0
        %v557 = vmax.f32 %v551, 0.0
        %v558 = vmax.f32 %v552, 0.0
        %v559 = vmin.f32 %v553, 6.0
        %v560 = vmin.f32 %v554, 6.0
        %v561 = vmin.f32 %v555, 6.0
        %v562 = vmin.f32 %v556, 6.0
        %v563 = vmin.f32 %v557, 6.0
        %v564 = vmin.f32 %v558, 6.0
        %v565 = vld [vmem:[%s4] sm:$0xff]
        %v566 = vld [vmem:[%s4 + $0x8] sm:$0xff]
        %v567 = vld [vmem:[%s4 + $0x10] sm:$0xff]
        %v568 = vld [vmem:[%s4 + $0x18] sm:$0xff]
        %v569 = vld [vmem:[%s4 + $0x20] sm:$0xff]
        %v570 = vld [vmem:[%s4 + $0x28] sm:$0xff]
        %v571 = vld [vmem:[%s4 + $0x30] sm:$0xff]
        %v572 = vld [vmem:[%s4 + $0x38] sm:$0xff]
        %v573 = vld [vmem:[%s4 + $0x40] sm:$0xff]
        %v574 = vld [vmem:[%s4 + $0x48] sm:$0xff]
        %v575 = vld [vmem:[%s4 + $0x50] sm:$0xff]
        %v576 = vld [vmem:[%s4 + $0x58] sm:$0xff]
        %578 = vset.pattern.permute.xlu0 0
        %579 = vperm.xlu0 %578, %v565
        %v580 = vpop.permute.xlu0 %579
        %583 = vset.pattern.permute.xlu0 0
        %584 = vperm.xlu0 %583, %v566
        %v585 = vpop.permute.xlu0 %584
        %588 = vset.pattern.permute.xlu0 0
        %589 = vperm.xlu0 %588, %v567
        %v590 = vpop.permute.xlu0 %589
        %593 = vset.pattern.permute.xlu0 0
        %594 = vperm.xlu0 %593, %v568
        %v595 = vpop.permute.xlu0 %594
        %598 = vset.pattern.permute.xlu0 0
        %599 = vperm.xlu0 %598, %v569
        %v600 = vpop.permute.xlu0 %599
        %603 = vset.pattern.permute.xlu0 0
        %604 = vperm.xlu0 %603, %v570
        %v605 = vpop.permute.xlu0 %604
        %608 = vset.pattern.permute.xlu0 0
        %609 = vperm.xlu0 %608, %v571
        %v610 = vpop.permute.xlu0 %609
        %613 = vset.pattern.permute.xlu0 0
        %614 = vperm.xlu0 %613, %v572
        %v615 = vpop.permute.xlu0 %614
        %618 = vset.pattern.permute.xlu0 0
        %619 = vperm.xlu0 %618, %v573
        %v620 = vpop.permute.xlu0 %619
        %623 = vset.pattern.permute.xlu0 0
        %624 = vperm.xlu0 %623, %v574
        %v625 = vpop.permute.xlu0 %624
        %628 = vset.pattern.permute.xlu0 0
        %629 = vperm.xlu0 %628, %v575
        %v630 = vpop.permute.xlu0 %629
        %633 = vset.pattern.permute.xlu0 0
        %634 = vperm.xlu0 %633, %v576
        %v635 = vpop.permute.xlu0 %634
        %v637 = vmul.f32 %v559, %v580
        %v638 = vmul.f32 %v560, %v580
        %v639 = vmul.f32 %v561, %v585
        %v640 = vmul.f32 %v562, %v585
        %v641 = vmul.f32 %v563, %v590
        %v642 = vmul.f32 %v564, %v590
        %v643 = vmul.f32 %v559, %v595
        %v644 = vmul.f32 %v560, %v595
        %v645 = vmul.f32 %v561, %v600
        %v646 = vmul.f32 %v562, %v600
        %v647 = vmul.f32 %v563, %v605
        %v648 = vmul.f32 %v564, %v605
        %v649 = vmul.f32 %v559, %v610
        %v650 = vmul.f32 %v560, %v610
        %v651 = vmul.f32 %v561, %v615
        %v652 = vmul.f32 %v562, %v615
        %v653 = vmul.f32 %v563, %v620
        %v654 = vmul.f32 %v564, %v620
        %v655 = vmul.f32 %v559, %v625
        %v656 = vmul.f32 %v560, %v625
        %v657 = vmul.f32 %v561, %v630
        %v658 = vmul.f32 %v562, %v630
        %v659 = vmul.f32 %v563, %v635
        %v660 = vmul.f32 %v564, %v635
        %v661 = vld [vmem:[%s5] sm:$0xff]
        %v662 = vld [vmem:[%s5 + $0x8] sm:$0xff]
        %v663 = vld [vmem:[%s5 + $0x10] sm:$0xff]
        %v664 = vld [vmem:[%s5 + $0x18] sm:$0xff]
        %v665 = vld [vmem:[%s5 + $0x20] sm:$0xff]
        %v666 = vld [vmem:[%s5 + $0x28] sm:$0xff]
        %v667 = vld [vmem:[%s5 + $0x30] sm:$0xff]
        %v668 = vld [vmem:[%s5 + $0x38] sm:$0xff]
        %v669 = vld [vmem:[%s5 + $0x40] sm:$0xff]
        %v670 = vld [vmem:[%s5 + $0x48] sm:$0xff]
        %v671 = vld [vmem:[%s5 + $0x50] sm:$0xff]
        %v672 = vld [vmem:[%s5 + $0x58] sm:$0xff]
        %674 = vset.pattern.permute.xlu0 0
        %675 = vperm.xlu0 %674, %v661
        %v676 = vpop.permute.xlu0 %675
        %679 = vset.pattern.permute.xlu0 0
        %680 = vperm.xlu0 %679, %v662
        %v681 = vpop.permute.xlu0 %680
        %684 = vset.pattern.permute.xlu0 0
        %685 = vperm.xlu0 %684, %v663
        %v686 = vpop.permute.xlu0 %685
        %689 = vset.pattern.permute.xlu0 0
        %690 = vperm.xlu0 %689, %v664
        %v691 = vpop.permute.xlu0 %690
        %694 = vset.pattern.permute.xlu0 0
        %695 = vperm.xlu0 %694, %v665
        %v696 = vpop.permute.xlu0 %695
        %699 = vset.pattern.permute.xlu0 0
        %700 = vperm.xlu0 %699, %v666
        %v701 = vpop.permute.xlu0 %700
        %704 = vset.pattern.permute.xlu0 0
        %705 = vperm.xlu0 %704, %v667
        %v706 = vpop.permute.xlu0 %705
        %709 = vset.pattern.permute.xlu0 0
        %710 = vperm.xlu0 %709, %v668
        %v711 = vpop.permute.xlu0 %710
        %714 = vset.pattern.permute.xlu0 0
        %715 = vperm.xlu0 %714, %v669
        %v716 = vpop.permute.xlu0 %715
        %719 = vset.pattern.permute.xlu0 0
        %720 = vperm.xlu0 %719, %v670
        %v721 = vpop.permute.xlu0 %720
        %724 = vset.pattern.permute.xlu0 0
        %725 = vperm.xlu0 %724, %v671
        %v726 = vpop.permute.xlu0 %725
        %729 = vset.pattern.permute.xlu0 0
        %730 = vperm.xlu0 %729, %v672
        %v731 = vpop.permute.xlu0 %730
        %v733 = vadd.f32 %v637, %v676
        %v734 = vadd.f32 %v638, %v676
        %v735 = vadd.f32 %v639, %v681
        %v736 = vadd.f32 %v640, %v681
        %v737 = vadd.f32 %v641, %v686
        %v738 = vadd.f32 %v642, %v686
        %v739 = vadd.f32 %v643, %v691
        %v740 = vadd.f32 %v644, %v691
        %v741 = vadd.f32 %v645, %v696
        %v742 = vadd.f32 %v646, %v696
        %v743 = vadd.f32 %v647, %v701
        %v744 = vadd.f32 %v648, %v701
        %v745 = vadd.f32 %v649, %v706
        %v746 = vadd.f32 %v650, %v706
        %v747 = vadd.f32 %v651, %v711
        %v748 = vadd.f32 %v652, %v711
        %v749 = vadd.f32 %v653, %v716
        %v750 = vadd.f32 %v654, %v716
        %v751 = vadd.f32 %v655, %v721
        %v752 = vadd.f32 %v656, %v721
        %v753 = vadd.f32 %v657, %v726
        %v754 = vadd.f32 %v658, %v726
        %v755 = vadd.f32 %v659, %v731
        %v756 = vadd.f32 %v660, %v731
        %v757 = vmax.f32 %v733, 0.0
        %v758 = vmax.f32 %v734, 0.0
        %v759 = vmax.f32 %v735, 0.0
        %v760 = vmax.f32 %v736, 0.0
        %v761 = vmax.f32 %v737, 0.0
        %v762 = vmax.f32 %v738, 0.0
        %v763 = vmax.f32 %v739, 0.0
        %v764 = vmax.f32 %v740, 0.0
        %v765 = vmax.f32 %v741, 0.0
        %v766 = vmax.f32 %v742, 0.0
        %v767 = vmax.f32 %v743, 0.0
        %v768 = vmax.f32 %v744, 0.0
        %v769 = vmax.f32 %v745, 0.0
        %v770 = vmax.f32 %v746, 0.0
        %v771 = vmax.f32 %v747, 0.0
        %v772 = vmax.f32 %v748, 0.0
        %v773 = vmax.f32 %v749, 0.0
        %v774 = vmax.f32 %v750, 0.0
        %v775 = vmax.f32 %v751, 0.0
        %v776 = vmax.f32 %v752, 0.0
        %v777 = vmax.f32 %v753, 0.0
        %v778 = vmax.f32 %v754, 0.0
        %v779 = vmax.f32 %v755, 0.0
        %v780 = vmax.f32 %v756, 0.0
        %v781 = vmin.f32 %v757, 6.0
        %v782 = vmin.f32 %v758, 6.0
        %v783 = vmin.f32 %v759, 6.0
        %v784 = vmin.f32 %v760, 6.0
        %v785 = vmin.f32 %v761, 6.0
        %v786 = vmin.f32 %v762, 6.0
        %v787 = vmin.f32 %v763, 6.0
        %v788 = vmin.f32 %v764, 6.0
        %v789 = vmin.f32 %v765, 6.0
        %v790 = vmin.f32 %v766, 6.0
        %v791 = vmin.f32 %v767, 6.0
        %v792 = vmin.f32 %v768, 6.0
        %v793 = vmin.f32 %v769, 6.0
        %v794 = vmin.f32 %v770, 6.0
        %v795 = vmin.f32 %v771, 6.0
        %v796 = vmin.f32 %v772, 6.0
        %v797 = vmin.f32 %v773, 6.0
        %v798 = vmin.f32 %v774, 6.0
        %v799 = vmin.f32 %v775, 6.0
        %v800 = vmin.f32 %v776, 6.0
        %v801 = vmin.f32 %v777, 6.0
        %v802 = vmin.f32 %v778, 6.0
        %v803 = vmin.f32 %v779, 6.0
        %v804 = vmin.f32 %v780, 6.0
        %v805 = vld [vmem:[%s6] sm:$0xff]
        %v806 = vld [vmem:[%s6 + $0x8] sm:$0xff]
        %v807 = vld [vmem:[%s7] sm:$0xff]
        %v808 = vld [vmem:[%s7 + $0x8] sm:$0xff]
        %810 = vset.pattern.permute.xlu0 0
        %811 = vperm.xlu0 %810, %v807
        %v812 = vpop.permute.xlu0 %811
        %815 = vset.pattern.permute.xlu0 0
        %816 = vperm.xlu0 %815, %v808
        %v817 = vpop.permute.xlu0 %816
        %vm819 = vcmask 785408
        %v821 = vsel %vm819, %v805, 0
        %v824 = vsel %vm819, %v806, 0
        %826 = vmatprep.subr.mxu0 %v782
        %827 = vmatpush1.msra.mxu0 %v781
        %828 = vmatprep.subr.mxu0 %v784
        %829 = vmatpush1.msra.mxu0 %v783
        %830 = vmatprep.subr.mxu0 %v786
        %831 = vmatpush1.msra.mxu0 %v785
        %832 = vmatprep.subr.mxu0 %v788
        %833 = vmatpush1.msra.mxu0 %v787
        %834 = vmatprep.subr.mxu0 %v790
        %835 = vmatpush1.msra.mxu0 %v789
        %836 = vmatprep.subr.mxu0 %v792
        %837 = vmatpush1.msra.mxu0 %v791
        %838 = vmatprep.subr.mxu0 %v794
        %839 = vmatpush1.msra.mxu0 %v793
        %840 = vmatprep.subr.mxu0 %v796
        %841 = vmatpush1.msra.mxu0 %v795
        %842 = vmatprep.subr.mxu0 %v798
        %843 = vmatpush1.msra.mxu0 %v797
        %844 = vmatprep.subr.mxu0 %v800
        %845 = vmatpush1.msra.mxu0 %v799
        %846 = vmatprep.subr.mxu0 %v802
        %847 = vmatpush1.msra.mxu0 %v801
        %848 = vmatprep.subr.mxu0 %v804
        %849 = vmatpush1.msra.mxu0 %v803
        %850 = vmatprep.subr.mxu0 0.0
        %851 = vmatpush1.msra.mxu0 0.0
        %852 = vmatprep.subr.mxu0 0.0
        %853 = vmatpush1.msra.mxu0 0.0
        %854 = vmatprep.subr.mxu0 0.0
        %855 = vmatpush1.msra.mxu0 0.0
        %856 = vmatprep.subr.mxu0 0.0
        %857 = vmatpush1.msra.mxu0 0.0
        %858 = vmatprep.subr.mxu0 0.0
        %859 = vmatpush1.msra.mxu0 0.0
        %860 = vmatprep.subr.mxu0 0.0
        %861 = vmatpush1.msra.mxu0 0.0
        %862 = vmatprep.subr.mxu0 0.0
        %863 = vmatpush1.msra.mxu0 0.0
        %864 = vmatprep.subr.mxu0 0.0
        %865 = vmatpush1.msra.mxu0 0.0
        %866 = vmatprep.subr.mxu0 0.0
        %867 = vmatpush1.msra.mxu0 0.0
        %868 = vmatprep.subr.mxu0 0.0
        %869 = vmatpush1.msra.mxu0 0.0
        %870 = vmatprep.subr.mxu0 0.0
        %871 = vmatpush1.msra.mxu0 0.0
        %872 = vmatprep.subr.mxu0 0.0
        %873 = vmatpush1.msra.mxu0 0.0
        %874 = vmatprep.subr.mxu0 0.0
        %875 = vmatpush1.msra.mxu0 0.0
        %876 = vmatprep.subr.mxu0 0.0
        %877 = vmatpush1.msra.mxu0 0.0
        %878 = vmatprep.subr.mxu0 0.0
        %879 = vmatpush1.msra.mxu0 0.0
        %880 = vmatprep.subr.mxu0 0.0
        %881 = vmatpush1.msra.mxu0 0.0
        %882 = vmatprep.subr.mxu0 0.0
        %883 = vmatpush1.msra.mxu0 0.0
        %884 = vmatprep.subr.mxu0 0.0
        %885 = vmatpush1.msra.mxu0 0.0
        %886 = vmatprep.subr.mxu0 0.0
        %887 = vmatpush1.msra.mxu0 0.0
        %888 = vmatprep.subr.mxu0 0.0
        %889 = vmatpush1.msra.mxu0 0.0
        %890 = vmatprep.mubr.f32.mxu0 0.0
        %891 = vmatmul.mubr.f32.gmra.mrb[0].mxu0 %v821
        %v892 = vpop.f32.mrb[0].mxu0
        %v893 = vadd.f32 %v812, %v892
        %v894 = vpop.f32.mrb[0].mxu0
        %v895 = vadd.f32 %v812, %v894
        %896 = vmatprep.mubr.f32.mxu0 0.0
        %897 = vmatmul.mubr.f32.gmra.mrb[0].mxu0 %v824
        %v898 = vpop.f32.mrb[0].mxu0
        %v899 = vadd.f32 %v817, %v898
        %v900 = vpop.f32.mrb[0].mxu0
        %v901 = vadd.f32 %v817, %v900
        %902 = vdwg.mxu0
        %903 = vst [vmem:[%s323] sm:$0xff] %v893
        %904 = vst [vmem:[%s323 + $0x8] sm:$0xff] %v895
        %905 = vst [vmem:[%s323 + $0x10] sm:$0xff] %v899
        %906 = vst [vmem:[%s323 + $0x18] sm:$0xff] %v901
        %s907 = sand.u32 %s219, 1
        %s908 = scalar_lea.sflag [#allocation3], %s907
        %s909 = sand.u32 %s219, 1
        %s910 = smul.addr %s909, 32
        %s911 = scalar_lea.vmem [#allocation2], %s910
        // Predicated region
        $region53: #{tpu_custom_call.1} parent=51 // pred_check
          %p912 = pneg %p229
        $region54: #{tpu_custom_call.1} parent=51 // pred_check_branch
          %914 = sbr.rel (%p912) target = $region56
        $region55: #{tpu_custom_call.1} parent=51 // pred_region
          %s915 = smul.u32 2, %s27
          %s917 = ssub.s32 512, 512
          %918 = vsyncadd %s908, %s917
          %s919 = smul.addr %s26, 4
          %s920 = sadd.s32 %s915, %s919
          %s921 = smul.addr %s920, 128
          %s922 = scalar_lea.hbm %s8, %s921
          %s923 = sshll.u32 %s911, 4
          %s924 = int_to_ptr.vmem [resolvable:$true] %s923
          %929 = dma.vmem_to_hbm [thread:$0]  %s924, 512, %s922, %s908, 256, 256, 16
        $region56: #{tpu_custom_call.1} parent=51 // pred_fallthru
          _
      $region52: #{tpu_custom_call.1} parent=5 // pred_fallthru
        _
      %p930 = scmp.le.s32.totalorder 2, %s17
      // Predicated region
      $region57: #{tpu_custom_call.1} parent=5 // pred_check
        %p931 = pneg %p930
      $region58: #{tpu_custom_call.1} parent=5 // pred_check_branch
        %933 = sbr.rel (%p931) target = $region60
      $region59: #{tpu_custom_call.1} parent=5 // pred_region
        %s934 = ssub.s32 %s17, 2
        // Predicated region
        $region61: #{tpu_custom_call.1} parent=59 // pred_check
          %p935 = pneg %p235
        $region62: #{tpu_custom_call.1} parent=59 // pred_check_branch
          %937 = sbr.rel (%p935) target = $region64
        $region63: #{tpu_custom_call.1} parent=59 // pred_region
          %s938 = sand.u32 %s220, 1
          %s939 = scalar_lea.sflag [#allocation3], %s938
          %s940 = sand.u32 %s220, 1
          %s941 = smul.addr %s940, 32
          %s942 = scalar_lea.vmem [#allocation2], %s941
          %943 = dma.done %s939, 512
        $region64: #{tpu_custom_call.1} parent=59 // pred_fallthru
          _
      $region60: #{tpu_custom_call.1} parent=5 // pred_fallthru
        _
    $region6: #{tpu_custom_call.1} parent=1 // loop_footer
      %s21 = sadd.s32 1, %s17
    $region7: #{tpu_custom_call.1} parent=1 // loop_footer_branch
      %16 = sbr.rel target = $region3
    $region8: #{tpu_custom_call.1} parent=1 // loop_exit
      _
    %944 = vsyncpa [#allocation3], 1
    %s945 = scalar_lea.sflag [#allocation3], 1
    %946 = vsyncpa %s945, 1

</llo_original>
